<compile_context>
chip_gen: v7x
topology: tpu7x:2x2x1
jax: 0.10.0
libtpu: 0.0.40
codegen_flags: <defaults>
</compile_context>

<pallas_src>
import math
from functools import partial

import jax
import jax.numpy as jnp
from jax import lax
from jax.experimental import pallas as pl
from jax.experimental.pallas import tpu as pltpu


# ----------------------------- configuration --------------------------------
HIDDEN = 128         # hidden_channels (lane-dense demo size; real model: 256)
NUM_RBF = 32         # num_rbf (module default)
CUTOFF = 5.0
ALPHA = 5.0 / CUTOFF
MAX_Z = 100
N_NODES = 16         # atoms
NODES_PER_GRAPH = 8
N_GRAPH = 2
EPS_LN = 1e-5


def _round_up(x, m):
    return ((x + m - 1) // m) * m


def _chip_config():
    """Per-generation (edge_tile, vmem_limit_bytes, use_bf16_exp)."""
    kind = ""
    try:
        kind = jax.devices()[0].device_kind.lower()
    except Exception:
        pass
    if "v7" in kind:
        # 64 MiB physical VMEM: keep the double-buffered bf16 output tile +
        # grid-invariant operands comfortably under ~48 MiB scoped.
        return 4096, 48 * 1024 * 1024, True
    if "v6" in kind:
        # 128 MiB VMEM, 1.4 TB/s HBM: bigger tiles amortize ~0.35 us/step.
        return 8192, 64 * 1024 * 1024, True
    if "v5" in kind:
        # 128 MiB VMEM but no bf16 VPU/EUP path -> keep the exp in f32.
        return 8192, 64 * 1024 * 1024, False
    # Unknown chip: conservative budget (the demo problem is tiny anyway).
    return 2048, 32 * 1024 * 1024, False


# ------------------------------ edge kernel ----------------------------------
def _edge_kernel(dist_ref, means_ref, betas_ref, edge_wt_ref, edge_b_ref,
                 edge_out_ref, *, num_edges, use_bf16_exp):
    """ExpNormalSmearing RBF + edge_embedding Linear for one edge tile.

    dist_ref    : [1, TE]  lane-dense row of distances (padded > cutoff)
    means/betas : [R, 1]
    edge_wt     : [H, R]   torch Linear layout [out, in]
    edge_b      : [1, H]
    edge_out    : [TE, H]  bf16, torch [E, H] layout, padded rows zeroed
    """
    d = dist_ref[...]                                          # [1, TE] f32
    cut = jnp.where(d < CUTOFF,
                    0.5 * (jnp.cos(d * (math.pi / CUTOFF)) + 1.0),
                    0.0)                                       # CosineCutoff
    expd = jnp.exp(-ALPHA * d)                                 # [1, TE]
    # Exponent argument built in f32; the big R x TE exp runs in bf16 on
    # v6e/v7x (EUP bf16 path), f32 on v5e / unknown chips.
    arg = -betas_ref[...] * (expd - means_ref[...]) ** 2       # [R, TE] f32
    if use_bf16_exp:
        rbf = cut.astype(jnp.bfloat16) * jnp.exp(arg.astype(jnp.bfloat16))
    else:
        rbf = (cut * jnp.exp(arg)).astype(jnp.bfloat16)        # [R, TE] bf16
    # edge_embedding: contract the RBF sublane axis (R) against W's "in" axis
    # so the result lands directly in torch [TE, H] layout (H lane-dense, no
    # host-side transpose).  bf16 x bf16 MXU inputs, f32 accumulation.
    acc = lax.dot_general(
        rbf, edge_wt_ref[...].astype(jnp.bfloat16),
        dimension_numbers=(((0,), (1,)), ((), ())),
        preferred_element_type=jnp.float32)                    # [TE, H] f32
    out = acc + edge_b_ref[...]
    # Zero the padded edge rows so the padded slab never carries bias values.
    te = edge_out_ref.shape[0]
    row = lax.broadcasted_iota(jnp.int32, (te, 1), 0) + pl.program_id(0) * te
    out = jnp.where(row < num_edges, out, 0.0)
    edge_out_ref[...] = out.astype(edge_out_ref.dtype)         # bf16 store
    # TODO(synk): at real TE (>=4096) chunk the RBF + matmul over ~512-lane
    # sub-blocks (lax.fori_loop(unroll=True)) so the [R, TE] intermediate
    # stays in vregs instead of round-tripping through VMEM.


# ------------------------------ node kernel ----------------------------------
def _node_kernel(node_ref, gamma_ref, beta_ref, w1_ref, b1_ref, w2_ref, b2_ref,
                 node_e_ref):
    """out_norm LayerNorm + readout_energy MLP -> per-node energies [N, 1]."""
    x = node_ref[...]                                          # [N, H]
    mu = jnp.mean(x, axis=-1, keepdims=True)
    var = jnp.mean((x - mu) ** 2, axis=-1, keepdims=True)
    xn = (x - mu) * lax.rsqrt(var + EPS_LN)
    xn = xn * gamma_ref[...] + beta_ref[...]
    h = jnp.dot(xn, w1_ref[...],
                preferred_element_type=jnp.float32) + b1_ref[...]
    h = h * jax.nn.sigmoid(h)                                  # SiLU
    # H/2 -> 1 projection as a lane reduction (no [H2, 1] MXU op).
    node_e_ref[...] = (jnp.sum(h * w2_ref[...], axis=-1, keepdims=True)
                       + b2_ref[...])


# ------------------------------ wrappers --------------------------------------
def _edge_feats_call(dist, params, *, edge_tile, vmem_limit, use_bf16_exp):
    E = dist.shape[0]
    edge_tile = min(edge_tile, max(128, _round_up(E, 128)))
    n_tiles = pl.cdiv(E, edge_tile)
    E_pad = n_tiles * edge_tile

    # Pad with a distance beyond the cutoff: cutoff_fn -> 0 -> rbf -> 0 (the
    # kernel additionally zero-masks the padded rows of the output).
    dist_row = jnp.full((1, E_pad), 2.0 * CUTOFF, jnp.float32)
    dist_row = dist_row.at[0, :E].set(dist.astype(jnp.float32))

    edge_map = lambda i: (0, i)     # dist row tiled along the edge axis
    out_map = lambda i: (i, 0)      # [E_pad, H] tiled along edges (sublanes)
    const_map = lambda i: (0, 0)    # grid-invariant: DMA'd once, stays in VMEM
    # NOTE: at real scale the const-map operands could be single-buffered
    # (pipeline_mode=pl.Buffered(1)) to free VMEM for a larger EDGE_TILE;
    # left at the default here since the demo operands are tiny.

    grid_spec = pltpu.PrefetchScalarGridSpec(
        num_scalar_prefetch=0,
        grid=(n_tiles,),
        in_specs=[
            pl.BlockSpec((1, edge_tile), edge_map),        # dist row
            pl.BlockSpec((NUM_RBF, 1), const_map),         # rbf means
            pl.BlockSpec((NUM_RBF, 1), const_map),         # rbf betas
            pl.BlockSpec((HIDDEN, NUM_RBF), const_map),    # edge W [out, in]
            pl.BlockSpec((1, HIDDEN), const_map),          # edge b
        ],
        out_specs=pl.BlockSpec((edge_tile, HIDDEN), out_map),
    )

    flops = 2 * E_pad * NUM_RBF * HIDDEN + 8 * E_pad * NUM_RBF
    transcend = E_pad * (NUM_RBF + 2)
    bytes_acc = (4 * (E_pad + 2 * NUM_RBF + HIDDEN * NUM_RBF + HIDDEN)
                 + 2 * HIDDEN * E_pad)   # bf16 writeback

    edge_pad = pl.pallas_call(
        partial(_edge_kernel, num_edges=E, use_bf16_exp=use_bf16_exp),
        out_shape=jax.ShapeDtypeStruct((E_pad, HIDDEN), jnp.bfloat16),
        grid_spec=grid_spec,
        compiler_params=pltpu.CompilerParams(
            dimension_semantics=("parallel",),   # edge tiles fully independent
            vmem_limit_bytes=vmem_limit,
        ),
        cost_estimate=pl.CostEstimate(flops=flops,
                                      transcendentals=transcend,
                                      bytes_accessed=bytes_acc),
    )(
        dist_row,
        params["rbf_means"].reshape(NUM_RBF, 1),
        params["rbf_betas"].reshape(NUM_RBF, 1),
        params["edge_w"],
        params["edge_b"].reshape(1, HIDDEN),
    )
    # Leading-axis slice only (no transpose); padded rows are already zero.
    return edge_pad[:E]


def _node_energy_call(node_scalar, params):
    N = node_scalar.shape[0]
    H2 = HIDDEN // 2
    const_map = lambda i: (0, 0)
    grid_spec = pltpu.PrefetchScalarGridSpec(
        num_scalar_prefetch=0,
        grid=(1,),
        in_specs=[
            pl.BlockSpec((N, HIDDEN), const_map),          # node_scalar
            pl.BlockSpec((1, HIDDEN), const_map),          # ln gamma
            pl.BlockSpec((1, HIDDEN), const_map),          # ln beta
            pl.BlockSpec((HIDDEN, H2), const_map),         # readout W1
            pl.BlockSpec((1, H2), const_map),              # readout b1
            pl.BlockSpec((1, H2), const_map),              # readout W2 (row)
            pl.BlockSpec((1, 1), const_map),               # readout b2
        ],
        out_specs=pl.BlockSpec((N, 1), const_map),
    )
    node_e = pl.pallas_call(
        _node_kernel,
        out_shape=jax.ShapeDtypeStruct((N, 1), jnp.float32),
        grid_spec=grid_spec,
        compiler_params=pltpu.CompilerParams(
            dimension_semantics=("arbitrary",)),
    )(
        node_scalar.astype(jnp.float32),
        params["ln_gamma"].reshape(1, HIDDEN),
        params["ln_beta"].reshape(1, HIDDEN),
        params["re_w1"],
        params["re_b1"].reshape(1, H2),
        params["re_w2"].reshape(1, H2),
        params["re_b2"].reshape(1, 1),
    )
    return node_e[:, 0]


# ------------------------------ LiTEN forward --------------------------------
@partial(jax.jit, static_argnames=("n_graph", "edge_tile", "vmem_limit",
                                   "use_bf16_exp"))
def _liten_forward_impl(params, z, pos, batch, edge_index, shift, n_graph,
                        edge_tile, vmem_limit, use_bf16_exp):
    # node embedding (gather — glue, fused by XLA under jit)
    node_scalar = params["embedding"][z]                         # [N, H]

    # Edge_Connect (glue): edge vectors / distances; loop=True keeps self edges.
    row, col = edge_index[0], edge_index[1]
    vec = pos[row] - pos[col] + shift                            # [E, 3]
    dist = jnp.sqrt(jnp.sum(vec * vec, axis=-1))                 # [E]

    # radial_fn + edge_embedding (fused Pallas kernel, bf16 [E, H] output)
    edge_feats = _edge_feats_call(dist, params, edge_tile=edge_tile,
                                  vmem_limit=vmem_limit,
                                  use_bf16_exp=use_bf16_exp)

    # TODO(synk): MBI interaction layers (and the node_vector state they
    # consume) are not defined in the provided source — skipped; edge_feats is
    # returned so the edge path is not DCE'd under jit.

    # out_norm + readout_energy (own tiny pallas_call so the edge grid above
    # stays "parallel" across TensorCores on v7x)
    node_energy = _node_energy_call(node_scalar, params)

    # per-graph scatter(sum) — O(N) segment sum instead of a one-hot matmul.
    energy = jax.ops.segment_sum(node_energy, batch, num_segments=n_graph)
    return energy, edge_feats


def liten_forward(params, z, pos, batch, edge_index, shift, n_graph=1):
    edge_tile, vmem_limit, use_bf16_exp = _chip_config()
    return _liten_forward_impl(params, z, pos, batch, edge_index, shift,
                               n_graph, edge_tile, vmem_limit, use_bf16_exp)


# ------------------------------ parameters -----------------------------------
def init_params(key):
    ks = jax.random.split(key, 4)
    H2 = HIDDEN // 2
    # ExpNormalSmearing init (TorchMD-Net convention, cutoff_lower = 0)
    start = math.exp(-CUTOFF)
    means = jnp.linspace(start, 1.0, NUM_RBF, dtype=jnp.float32)
    betas = jnp.full((NUM_RBF,), (2.0 / NUM_RBF * (1.0 - start)) ** -2,
                     dtype=jnp.float32)
    return {
        "embedding": jax.random.normal(ks[0], (MAX_Z, HIDDEN), jnp.float32),
        "rbf_means": means,
        "rbf_betas": betas,
        # edge_embedding: torch Linear layout [out_features, in_features]
        "edge_w": jax.random.normal(ks[1], (HIDDEN, NUM_RBF), jnp.float32)
                  * (1.0 / math.sqrt(NUM_RBF)),
        "edge_b": jnp.zeros((HIDDEN,), jnp.float32),
        "ln_gamma": jnp.ones((HIDDEN,), jnp.float32),
        "ln_beta": jnp.zeros((HIDDEN,), jnp.float32),
        # readout_energy MLP ("math" layout: x @ W1)
        "re_w1": jax.random.normal(ks[2], (HIDDEN, H2), jnp.float32)
                 * (1.0 / math.sqrt(HIDDEN)),
        "re_b1": jnp.zeros((H2,), jnp.float32),
        "re_w2": jax.random.normal(ks[3], (H2,), jnp.float32)
                 * (1.0 / math.sqrt(H2)),
        "re_b2": jnp.zeros((1,), jnp.float32),
    }


# ------------------------------ main ------------------------------------------
if __name__ == "__main__":
    key = jax.random.PRNGKey(0)
    kp, kz, kpos = jax.random.split(key, 3)
    params = init_params(kp)

    # small deterministic inputs: 2 graphs x 8 atoms
    z = jax.random.randint(kz, (N_NODES,), 1, MAX_Z)
    pos = jax.random.uniform(kpos, (N_NODES, 3), jnp.float32, 0.0, 3.0)
    batch = jnp.repeat(jnp.arange(N_GRAPH, dtype=jnp.int32), NODES_PER_GRAPH)

    # dense all-pairs (incl. self-loops, matching loop=True) edges per graph
    rows, cols = [], []
    for g in range(N_GRAPH):
        off = g * NODES_PER_GRAPH
        for i in range(NODES_PER_GRAPH):
            for j in range(NODES_PER_GRAPH):
                rows.append(off + i)
                cols.append(off + j)
    edge_index = jnp.array([rows, cols], dtype=jnp.int32)         # [2, E]
    shift = jnp.zeros((edge_index.shape[1], 3), jnp.float32)

    energy, edge_feats = liten_forward(params, z, pos, batch, edge_index,
                                       shift, n_graph=N_GRAPH)
    jax.block_until_ready((energy, edge_feats))
    assert energy.shape == (N_GRAPH,)
    assert edge_feats.shape == (edge_index.shape[1], HIDDEN)
    assert edge_feats.dtype == jnp.bfloat16
    print("KERNEL_OK")
</pallas_src>

<mosaic_0001>
module attributes {stable_mosaic.version = 11 : i64} {
  func.func private @main(%arg0: i32) attributes {dimension_semantics = [#tpu.dimension_semantics<core_parallel>], iteration_bounds = array<i64: 2>, tpu.core_type = #tpu.core_type<sc_scalar_subcore>, window_params = []} {
    return
  }
}

module attributes {stable_mosaic.version = 11 : i64} {
  func.func private @main(%arg0: i32) attributes {dimension_semantics = [#tpu.dimension_semantics<core_parallel>], iteration_bounds = array<i64: 2>, tpu.core_type = #tpu.core_type<sc_scalar_subcore>, window_params = []} {
    return
  }
}

module attributes {stable_mosaic.version = 11 : i64} {
  func.func @_node_kernel(%arg0: i32, %arg1: memref<16x128xf32, #tpu.memory_space<vmem>>, %arg2: memref<1x128xf32, #tpu.memory_space<vmem>>, %arg3: memref<1x128xf32, #tpu.memory_space<vmem>>, %arg4: memref<128x64xf32, #tpu.memory_space<vmem>>, %arg5: memref<1x64xf32, #tpu.memory_space<vmem>>, %arg6: memref<1x64xf32, #tpu.memory_space<vmem>>, %arg7: memref<1x1xf32, #tpu.memory_space<vmem>>, %arg8: memref<16x1xf32, #tpu.memory_space<vmem>>) attributes {dimension_semantics = [#tpu.dimension_semantics<arbitrary>], iteration_bounds = array<i64: 1>, scalar_prefetch = 0 : i64, scratch_operands = 0 : i64, tpu.core_type = #tpu.core_type<tc>, window_params = [{pipeline_mode = #tpu.pipeline_mode<synchronous>, transform_indices = @transform_0, window_bounds = array<i64: 16, 128>}, {pipeline_mode = #tpu.pipeline_mode<synchronous>, transform_indices = @transform_1, window_bounds = array<i64: 1, 128>}, {pipeline_mode = #tpu.pipeline_mode<synchronous>, transform_indices = @transform_2, window_bounds = array<i64: 1, 128>}, {pipeline_mode = #tpu.pipeline_mode<synchronous>, transform_indices = @transform_3, window_bounds = array<i64: 128, 64>}, {pipeline_mode = #tpu.pipeline_mode<synchronous>, transform_indices = @transform_4, window_bounds = array<i64: 1, 64>}, {pipeline_mode = #tpu.pipeline_mode<synchronous>, transform_indices = @transform_5, window_bounds = array<i64: 1, 64>}, {pipeline_mode = #tpu.pipeline_mode<synchronous>, transform_indices = @transform_6, window_bounds = array<i64: 1, 1>}, {pipeline_mode = #tpu.pipeline_mode<synchronous>, transform_indices = @transform_7, window_bounds = array<i64: 16, 1>}]} {
    %c0 = arith.constant 0 : index
    %c0_0 = arith.constant 0 : index
    %0 = vector.load %arg1[%c0, %c0_0] : memref<16x128xf32, #tpu.memory_space<vmem>>, vector<16x128xf32>
    %cst = arith.constant dense<0.000000e+00> : vector<16xf32>
    %1 = vector.multi_reduction <add>, %0, %cst [1] : vector<16x128xf32> to vector<16xf32>
    %2 = vector.shape_cast %1 : vector<16xf32> to vector<16x1xf32>
    %cst_1 = arith.constant 1.280000e+02 : f32
    %3 = vector.broadcast %cst_1 : f32 to vector<16x1xf32>
    %4 = arith.divf %2, %3 : vector<16x1xf32>
    %5 = vector.broadcast %4 : vector<16x1xf32> to vector<16x128xf32>
    %6 = arith.subf %0, %5 : vector<16x128xf32>
    %7 = arith.mulf %6, %6 : vector<16x128xf32>
    %cst_2 = arith.constant dense<0.000000e+00> : vector<16xf32>
    %8 = vector.multi_reduction <add>, %7, %cst_2 [1] : vector<16x128xf32> to vector<16xf32>
    %9 = vector.shape_cast %8 : vector<16xf32> to vector<16x1xf32>
    %cst_3 = arith.constant 1.280000e+02 : f32
    %10 = vector.broadcast %cst_3 : f32 to vector<16x1xf32>
    %11 = arith.divf %9, %10 : vector<16x1xf32>
    %12 = vector.broadcast %4 : vector<16x1xf32> to vector<16x128xf32>
    %13 = arith.subf %0, %12 : vector<16x128xf32>
    %cst_4 = arith.constant 9.99999974E-6 : f32
    %14 = vector.broadcast %cst_4 : f32 to vector<16x1xf32>
    %15 = arith.addf %11, %14 : vector<16x1xf32>
    %16 = math.rsqrt %15 : vector<16x1xf32>
    %17 = vector.broadcast %16 : vector<16x1xf32> to vector<16x128xf32>
    %18 = arith.mulf %13, %17 : vector<16x128xf32>
    %c0_5 = arith.constant 0 : index
    %c0_6 = arith.constant 0 : index
    %19 = vector.load %arg2[%c0_5, %c0_6] : memref<1x128xf32, #tpu.memory_space<vmem>>, vector<1x128xf32>
    %20 = vector.broadcast %19 : vector<1x128xf32> to vector<16x128xf32>
    %21 = arith.mulf %18, %20 : vector<16x128xf32>
    %c0_7 = arith.constant 0 : index
    %c0_8 = arith.constant 0 : index
    %22 = vector.load %arg3[%c0_7, %c0_8] : memref<1x128xf32, #tpu.memory_space<vmem>>, vector<1x128xf32>
    %23 = vector.broadcast %22 : vector<1x128xf32> to vector<16x128xf32>
    %24 = arith.addf %21, %23 : vector<16x128xf32>
    %c0_9 = arith.constant 0 : index
    %c0_10 = arith.constant 0 : index
    %25 = vector.load %arg4[%c0_9, %c0_10] : memref<128x64xf32, #tpu.memory_space<vmem>>, vector<128x64xf32>
    %cst_11 = arith.constant dense<0.000000e+00> : vector<16x64xf32>
    %26 = tpu.matmul %24, %25, %cst_11 {dimension_numbers = #tpu.dot_dimension_numbers<[1], [0], [0], [1], [0, 0, 1, 1], [], []>} : vector<16x128xf32>, vector<128x64xf32>, vector<16x64xf32> -> vector<16x64xf32>
    %c0_12 = arith.constant 0 : index
    %c0_13 = arith.constant 0 : index
    %27 = vector.load %arg5[%c0_12, %c0_13] : memref<1x64xf32, #tpu.memory_space<vmem>>, vector<1x64xf32>
    %28 = vector.broadcast %27 : vector<1x64xf32> to vector<16x64xf32>
    %29 = arith.addf %26, %28 : vector<16x64xf32>
    %30 = arith.negf %29 : vector<16x64xf32>
    %31 = math.exp %30 : vector<16x64xf32>
    %cst_14 = arith.constant 1.000000e+00 : f32
    %32 = vector.broadcast %cst_14 : f32 to vector<16x64xf32>
    %33 = arith.addf %32, %31 : vector<16x64xf32>
    %34 = arith.divf %32, %33 : vector<16x64xf32>
    %35 = arith.mulf %29, %34 : vector<16x64xf32>
    %c0_15 = arith.constant 0 : index
    %c0_16 = arith.constant 0 : index
    %36 = vector.load %arg6[%c0_15, %c0_16] : memref<1x64xf32, #tpu.memory_space<vmem>>, vector<1x64xf32>
    %37 = vector.broadcast %36 : vector<1x64xf32> to vector<16x64xf32>
    %38 = arith.mulf %35, %37 : vector<16x64xf32>
    %cst_17 = arith.constant dense<0.000000e+00> : vector<16xf32>
    %39 = vector.multi_reduction <add>, %38, %cst_17 [1] : vector<16x64xf32> to vector<16xf32>
    %40 = vector.shape_cast %39 : vector<16xf32> to vector<16x1xf32>
    %c0_18 = arith.constant 0 : index
    %c0_19 = arith.constant 0 : index
    %41 = vector.load %arg7[%c0_18, %c0_19] : memref<1x1xf32, #tpu.memory_space<vmem>>, vector<1x1xf32>
    %42 = vector.broadcast %41 : vector<1x1xf32> to vector<16x1xf32>
    %43 = arith.addf %40, %42 : vector<16x1xf32>
    %c0_20 = arith.constant 0 : index
    %c0_21 = arith.constant 0 : index
    %44 = vector.load %arg8[%c0_20, %c0_21] : memref<16x1xf32, #tpu.memory_space<vmem>>, vector<16x1xf32>
    tpu.vector_store %arg8[%c0_20, %c0_21], %43 {strides = array<i32>} : memref<16x1xf32, #tpu.memory_space<vmem>>, vector<16x1xf32>,
    return
  }
  func.func @transform_0(%arg0: i32) -> (i32, i32) {
    %c0_i32 = arith.constant 0 : i32
    %c0_i32_0 = arith.constant 0 : i32
    %c0_i32_1 = arith.constant 0 : i32
    return %c0_i32, %c0_i32_0 : i32, i32
  }
  func.func @transform_1(%arg0: i32) -> (i32, i32) {
    %c0_i32 = arith.constant 0 : i32
    %c0_i32_0 = arith.constant 0 : i32
    %c0_i32_1 = arith.constant 0 : i32
    return %c0_i32, %c0_i32_0 : i32, i32
  }
  func.func @transform_2(%arg0: i32) -> (i32, i32) {
    %c0_i32 = arith.constant 0 : i32
    %c0_i32_0 = arith.constant 0 : i32
    %c0_i32_1 = arith.constant 0 : i32
    return %c0_i32, %c0_i32_0 : i32, i32
  }
  func.func @transform_3(%arg0: i32) -> (i32, i32) {
    %c0_i32 = arith.constant 0 : i32
    %c0_i32_0 = arith.constant 0 : i32
    %c0_i32_1 = arith.constant 0 : i32
    return %c0_i32, %c0_i32_0 : i32, i32
  }
  func.func @transform_4(%arg0: i32) -> (i32, i32) {
    %c0_i32 = arith.constant 0 : i32
    %c0_i32_0 = arith.constant 0 : i32
    %c0_i32_1 = arith.constant 0 : i32
    return %c0_i32, %c0_i32_0 : i32, i32
  }
  func.func @transform_5(%arg0: i32) -> (i32, i32) {
    %c0_i32 = arith.constant 0 : i32
    %c0_i32_0 = arith.constant 0 : i32
    %c0_i32_1 = arith.constant 0 : i32
    return %c0_i32, %c0_i32_0 : i32, i32
  }
  func.func @transform_6(%arg0: i32) -> (i32, i32) {
    %c0_i32 = arith.constant 0 : i32
    %c0_i32_0 = arith.constant 0 : i32
    %c0_i32_1 = arith.constant 0 : i32
    return %c0_i32, %c0_i32_0 : i32, i32
  }
  func.func @transform_7(%arg0: i32) -> (i32, i32) {
    %c0_i32 = arith.constant 0 : i32
    %c0_i32_0 = arith.constant 0 : i32
    %c0_i32_1 = arith.constant 0 : i32
    return %c0_i32, %c0_i32_0 : i32, i32
  }
}

module attributes {stable_mosaic.version = 11 : i64} {
  func.func @_edge_kernel(%arg0: i32, %arg1: memref<1x128xf32, #tpu.memory_space<vmem>>, %arg2: memref<32x1xf32, #tpu.memory_space<vmem>>, %arg3: memref<32x1xf32, #tpu.memory_space<vmem>>, %arg4: memref<128x32xf32, #tpu.memory_space<vmem>>, %arg5: memref<1x128xf32, #tpu.memory_space<vmem>>, %arg6: memref<128x128xbf16, #tpu.memory_space<vmem>>) attributes {dimension_semantics = [#tpu.dimension_semantics<parallel>], iteration_bounds = array<i64: 1>, scalar_prefetch = 0 : i64, scratch_operands = 0 : i64, tpu.core_type = #tpu.core_type<tc>, window_params = [{transform_indices = @transform_0, window_bounds = array<i64: 1, 128>}, {pipeline_mode = #tpu.pipeline_mode<synchronous>, transform_indices = @transform_1, window_bounds = array<i64: 32, 1>}, {pipeline_mode = #tpu.pipeline_mode<synchronous>, transform_indices = @transform_2, window_bounds = array<i64: 32, 1>}, {pipeline_mode = #tpu.pipeline_mode<synchronous>, transform_indices = @transform_3, window_bounds = array<i64: 128, 32>}, {pipeline_mode = #tpu.pipeline_mode<synchronous>, transform_indices = @transform_4, window_bounds = array<i64: 1, 128>}, {transform_indices = @transform_5, window_bounds = array<i64: 128, 128>}]} {
    %c0 = arith.constant 0 : index
    %c0_0 = arith.constant 0 : index
    %0 = vector.load %arg1[%c0, %c0_0] : memref<1x128xf32, #tpu.memory_space<vmem>>, vector<1x128xf32>
    %cst = arith.constant 5.000000e+00 : f32
    %1 = vector.broadcast %cst : f32 to vector<1x128xf32>
    %2 = arith.cmpf olt, %0, %1 : vector<1x128xf32>
    %cst_1 = arith.constant 0.628318548 : f32
    %3 = vector.broadcast %cst_1 : f32 to vector<1x128xf32>
    %4 = arith.mulf %0, %3 : vector<1x128xf32>
    %5 = math.cos %4 : vector<1x128xf32>
    %cst_2 = arith.constant 1.000000e+00 : f32
    %6 = vector.broadcast %cst_2 : f32 to vector<1x128xf32>
    %7 = arith.addf %5, %6 : vector<1x128xf32>
    %cst_3 = arith.constant 5.000000e-01 : f32
    %8 = vector.broadcast %cst_3 : f32 to vector<1x128xf32>
    %9 = arith.mulf %8, %7 : vector<1x128xf32>
    %cst_4 = arith.constant 0.000000e+00 : f32
    %10 = vector.broadcast %cst_4 : f32 to vector<1x128xf32>
    %11 = arith.select %2, %9, %10 : vector<1x128xi1>, vector<1x128xf32>
    %cst_5 = arith.constant -1.000000e+00 : f32
    %12 = vector.broadcast %cst_5 : f32 to vector<1x128xf32>
    %13 = arith.mulf %12, %0 : vector<1x128xf32>
    %14 = math.exp %13 : vector<1x128xf32>
    %c0_6 = arith.constant 0 : index
    %c0_7 = arith.constant 0 : index
    %15 = vector.load %arg3[%c0_6, %c0_7] : memref<32x1xf32, #tpu.memory_space<vmem>>, vector<32x1xf32>
    %cst_8 = arith.constant 0.000000e+00 : f32
    %16 = vector.broadcast %cst_8 : f32 to vector<32x1xf32>
    %17 = arith.subf %16, %15 : vector<32x1xf32>
    %c0_9 = arith.constant 0 : index
    %c0_10 = arith.constant 0 : index
    %18 = vector.load %arg2[%c0_9, %c0_10] : memref<32x1xf32, #tpu.memory_space<vmem>>, vector<32x1xf32>
    %19 = vector.broadcast %14 : vector<1x128xf32> to vector<32x128xf32>
    %20 = vector.broadcast %18 : vector<32x1xf32> to vector<32x128xf32>
    %21 = arith.subf %19, %20 : vector<32x128xf32>
    %22 = arith.mulf %21, %21 : vector<32x128xf32>
    %23 = vector.broadcast %17 : vector<32x1xf32> to vector<32x128xf32>
    %24 = arith.mulf %23, %22 : vector<32x128xf32>
    %25 = math.exp %24 : vector<32x128xf32>
    %26 = vector.broadcast %11 : vector<1x128xf32> to vector<32x128xf32>
    %27 = arith.mulf %26, %25 : vector<32x128xf32>
    %28 = arith.truncf %27 : vector<32x128xf32> to vector<32x128xbf16>
    %c0_11 = arith.constant 0 : index
    %c0_12 = arith.constant 0 : index
    %29 = vector.load %arg4[%c0_11, %c0_12] : memref<128x32xf32, #tpu.memory_space<vmem>>, vector<128x32xf32>
    %30 = arith.truncf %29 : vector<128x32xf32> to vector<128x32xbf16>
    %cst_13 = arith.constant dense<0.000000e+00> : vector<128x128xf32>
    %31 = tpu.matmul %28, %30, %cst_13 {dimension_numbers = #tpu.dot_dimension_numbers<[0], [1], [1], [0], [0, 1, 1, 0], [], []>} : vector<32x128xbf16>, vector<128x32xbf16>, vector<128x128xf32> -> vector<128x128xf32>
    %c0_14 = arith.constant 0 : index
    %c0_15 = arith.constant 0 : index
    %32 = vector.load %arg5[%c0_14, %c0_15] : memref<1x128xf32, #tpu.memory_space<vmem>>, vector<1x128xf32>
    %33 = vector.broadcast %32 : vector<1x128xf32> to vector<128x128xf32>
    %34 = arith.addf %31, %33 : vector<128x128xf32>
    %35 = tpu.iota {dimensions = array<i32: 0>} : vector<128x1xi32>
    %c128_i32 = arith.constant 128 : i32
    %36 = arith.muli %arg0, %c128_i32 : i32
    %37 = vector.broadcast %36 : i32 to vector<128x1xi32>
    %38 = arith.addi %35, %37 : vector<128x1xi32>
    %c128_i32_16 = arith.constant 128 : i32
    %39 = vector.broadcast %c128_i32_16 : i32 to vector<128x1xi32>
    %40 = arith.cmpi slt, %38, %39 : vector<128x1xi32>
    %cst_17 = arith.constant 0.000000e+00 : f32
    %41 = vector.shape_cast %40 : vector<128x1xi1> to vector<128x1xi1>
    %42 = vector.broadcast %41 : vector<128x1xi1> to vector<128x128xi1>
    %43 = vector.broadcast %cst_17 : f32 to vector<128x128xf32>
    %44 = arith.select %42, %34, %43 : vector<128x128xi1>, vector<128x128xf32>
    %45 = arith.truncf %44 : vector<128x128xf32> to vector<128x128xbf16>
    %c0_18 = arith.constant 0 : index
    %c0_19 = arith.constant 0 : index
    %46 = vector.load %arg6[%c0_18, %c0_19] : memref<128x128xbf16, #tpu.memory_space<vmem>>, vector<128x128xbf16>
    tpu.vector_store %arg6[%c0_18, %c0_19], %45 {strides = array<i32>} : memref<128x128xbf16, #tpu.memory_space<vmem>>, vector<128x128xbf16>,
    return
  }
  func.func @transform_0(%arg0: i32) -> (i32, i32) {
    %c0_i32 = arith.constant 0 : i32
    %c0_i32_0 = arith.constant 0 : i32
    return %c0_i32, %arg0 : i32, i32
  }
  func.func @transform_1(%arg0: i32) -> (i32, i32) {
    %c0_i32 = arith.constant 0 : i32
    %c0_i32_0 = arith.constant 0 : i32
    %c0_i32_1 = arith.constant 0 : i32
    return %c0_i32, %c0_i32_0 : i32, i32
  }
  func.func @transform_2(%arg0: i32) -> (i32, i32) {
    %c0_i32 = arith.constant 0 : i32
    %c0_i32_0 = arith.constant 0 : i32
    %c0_i32_1 = arith.constant 0 : i32
    return %c0_i32, %c0_i32_0 : i32, i32
  }
  func.func @transform_3(%arg0: i32) -> (i32, i32) {
    %c0_i32 = arith.constant 0 : i32
    %c0_i32_0 = arith.constant 0 : i32
    %c0_i32_1 = arith.constant 0 : i32
    return %c0_i32, %c0_i32_0 : i32, i32
  }
  func.func @transform_4(%arg0: i32) -> (i32, i32) {
    %c0_i32 = arith.constant 0 : i32
    %c0_i32_0 = arith.constant 0 : i32
    %c0_i32_1 = arith.constant 0 : i32
    return %c0_i32, %c0_i32_0 : i32, i32
  }
  func.func @transform_5(%arg0: i32) -> (i32, i32) {
    %c0_i32 = arith.constant 0 : i32
    %c0_i32_0 = arith.constant 0 : i32
    return %arg0, %c0_i32 : i32, i32
  }
}

</mosaic_0001>

<llo_original>
// kernel: sub.1
$region0: #{sub.1}
  #allocation0 [shape = 's32[1]{0}', space=sflag, size = 0x4, scoped, tag = 'scoped memory for sub.1']
  %s0 = inlined_call_operand.vmem [shape: f32[128,3], index: 0, kind: input, shape index: {}]
  %s1 = inlined_call_operand.vmem [shape: f32[128,3], index: 1, kind: input, shape index: {}]
  %s2 = inlined_call_operand.vmem [shape: f32[128,3], index: 2, kind: output, shape index: {}]
  %v3 = vld [vmem:[%s0] sm:$0xff]
  %v4 = vld [vmem:[%s1] sm:$0xff]
  %5 = xla_tuple %v3, %v4
  %6 = xla_tuple %5
  %v7 = vsub.f32 %v3, %v4
  %8 = xla_tuple %v7
  %9 = vst [vmem:[%s2] sm:$0xff] %v7
  %s10 = scalar_lea.vmem %s0, 8
  %v11 = vld [vmem:[%s10] sm:$0xff]
  %s12 = scalar_lea.vmem %s1, 8
  %v13 = vld [vmem:[%s12] sm:$0xff]
  %14 = xla_tuple %v11, %v13
  %15 = xla_tuple %14
  %v16 = vsub.f32 %v11, %v13
  %17 = xla_tuple %v16
  %s18 = scalar_lea.vmem %s2, 8
  %19 = vst [vmem:[%s18] sm:$0xff] %v16
  %s20 = scalar_lea.vmem %s0, 16
  %v21 = vld [vmem:[%s20] sm:$0xff]
  %s22 = scalar_lea.vmem %s1, 16
  %v23 = vld [vmem:[%s22] sm:$0xff]
  %24 = xla_tuple %v21, %v23
  %25 = xla_tuple %24
  %v26 = vsub.f32 %v21, %v23
  %27 = xla_tuple %v26
  %s28 = scalar_lea.vmem %s2, 16
  %29 = vst [vmem:[%s28] sm:$0xff] %v26
  %s30 = scalar_lea.vmem %s0, 24
  %v31 = vld [vmem:[%s30] sm:$0xff]
  %s32 = scalar_lea.vmem %s1, 24
  %v33 = vld [vmem:[%s32] sm:$0xff]
  %34 = xla_tuple %v31, %v33
  %35 = xla_tuple %34
  %v36 = vsub.f32 %v31, %v33
  %37 = xla_tuple %v36
  %s38 = scalar_lea.vmem %s2, 24
  %39 = vst [vmem:[%s38] sm:$0xff] %v36
  %s40 = scalar_lea.vmem %s0, 32
  %v41 = vld [vmem:[%s40] sm:$0xff]
  %s42 = scalar_lea.vmem %s1, 32
  %v43 = vld [vmem:[%s42] sm:$0xff]
  %44 = xla_tuple %v41, %v43
  %45 = xla_tuple %44
  %v46 = vsub.f32 %v41, %v43
  %47 = xla_tuple %v46
  %s48 = scalar_lea.vmem %s2, 32
  %49 = vst [vmem:[%s48] sm:$0xff] %v46
  %s50 = scalar_lea.vmem %s0, 40
  %v51 = vld [vmem:[%s50] sm:$0xff]
  %s52 = scalar_lea.vmem %s1, 40
  %v53 = vld [vmem:[%s52] sm:$0xff]
  %54 = xla_tuple %v51, %v53
  %55 = xla_tuple %54
  %v56 = vsub.f32 %v51, %v53
  %57 = xla_tuple %v56
  %s58 = scalar_lea.vmem %s2, 40
  %59 = vst [vmem:[%s58] sm:$0xff] %v56
  %s60 = scalar_lea.vmem %s0, 48
  %v61 = vld [vmem:[%s60] sm:$0xff]
  %s62 = scalar_lea.vmem %s1, 48
  %v63 = vld [vmem:[%s62] sm:$0xff]
  %64 = xla_tuple %v61, %v63
  %65 = xla_tuple %64
  %v66 = vsub.f32 %v61, %v63
  %67 = xla_tuple %v66
  %s68 = scalar_lea.vmem %s2, 48
  %69 = vst [vmem:[%s68] sm:$0xff] %v66
  %s70 = scalar_lea.vmem %s0, 56
  %v71 = vld [vmem:[%s70] sm:$0xff]
  %s72 = scalar_lea.vmem %s1, 56
  %v73 = vld [vmem:[%s72] sm:$0xff]
  %74 = xla_tuple %v71, %v73
  %75 = xla_tuple %74
  %v76 = vsub.f32 %v71, %v73
  %77 = xla_tuple %v76
  %s78 = scalar_lea.vmem %s2, 56
  %79 = vst [vmem:[%s78] sm:$0xff] %v76
  %s80 = scalar_lea.vmem %s0, 64
  %v81 = vld [vmem:[%s80] sm:$0xff]
  %s82 = scalar_lea.vmem %s1, 64
  %v83 = vld [vmem:[%s82] sm:$0xff]
  %84 = xla_tuple %v81, %v83
  %85 = xla_tuple %84
  %v86 = vsub.f32 %v81, %v83
  %87 = xla_tuple %v86
  %s88 = scalar_lea.vmem %s2, 64
  %89 = vst [vmem:[%s88] sm:$0xff] %v86
  %s90 = scalar_lea.vmem %s0, 72
  %v91 = vld [vmem:[%s90] sm:$0xff]
  %s92 = scalar_lea.vmem %s1, 72
  %v93 = vld [vmem:[%s92] sm:$0xff]
  %94 = xla_tuple %v91, %v93
  %95 = xla_tuple %94
  %v96 = vsub.f32 %v91, %v93
  %97 = xla_tuple %v96
  %s98 = scalar_lea.vmem %s2, 72
  %99 = vst [vmem:[%s98] sm:$0xff] %v96
  %s100 = scalar_lea.vmem %s0, 80
  %v101 = vld [vmem:[%s100] sm:$0xff]
  %s102 = scalar_lea.vmem %s1, 80
  %v103 = vld [vmem:[%s102] sm:$0xff]
  %104 = xla_tuple %v101, %v103
  %105 = xla_tuple %104
  %v106 = vsub.f32 %v101, %v103
  %107 = xla_tuple %v106
  %s108 = scalar_lea.vmem %s2, 80
  %109 = vst [vmem:[%s108] sm:$0xff] %v106
  %s110 = scalar_lea.vmem %s0, 88
  %v111 = vld [vmem:[%s110] sm:$0xff]
  %s112 = scalar_lea.vmem %s1, 88
  %v113 = vld [vmem:[%s112] sm:$0xff]
  %114 = xla_tuple %v111, %v113
  %115 = xla_tuple %114
  %v116 = vsub.f32 %v111, %v113
  %117 = xla_tuple %v116
  %s118 = scalar_lea.vmem %s2, 88
  %119 = vst [vmem:[%s118] sm:$0xff] %v116
  %s120 = scalar_lea.vmem %s0, 96
  %v121 = vld [vmem:[%s120] sm:$0xff]
  %s122 = scalar_lea.vmem %s1, 96
  %v123 = vld [vmem:[%s122] sm:$0xff]
  %124 = xla_tuple %v121, %v123
  %125 = xla_tuple %124
  %v126 = vsub.f32 %v121, %v123
  %127 = xla_tuple %v126
  %s128 = scalar_lea.vmem %s2, 96
  %129 = vst [vmem:[%s128] sm:$0xff] %v126
  %s130 = scalar_lea.vmem %s0, 104
  %v131 = vld [vmem:[%s130] sm:$0xff]
  %s132 = scalar_lea.vmem %s1, 104
  %v133 = vld [vmem:[%s132] sm:$0xff]
  %134 = xla_tuple %v131, %v133
  %135 = xla_tuple %134
  %v136 = vsub.f32 %v131, %v133
  %137 = xla_tuple %v136
  %s138 = scalar_lea.vmem %s2, 104
  %139 = vst [vmem:[%s138] sm:$0xff] %v136
  %s140 = scalar_lea.vmem %s0, 112
  %v141 = vld [vmem:[%s140] sm:$0xff]
  %s142 = scalar_lea.vmem %s1, 112
  %v143 = vld [vmem:[%s142] sm:$0xff]
  %144 = xla_tuple %v141, %v143
  %145 = xla_tuple %144
  %v146 = vsub.f32 %v141, %v143
  %147 = xla_tuple %v146
  %s148 = scalar_lea.vmem %s2, 112
  %149 = vst [vmem:[%s148] sm:$0xff] %v146
  %s150 = scalar_lea.vmem %s0, 120
  %v151 = vld [vmem:[%s150] sm:$0xff]
  %s152 = scalar_lea.vmem %s1, 120
  %v153 = vld [vmem:[%s152] sm:$0xff]
  %154 = xla_tuple %v151, %v153
  %155 = xla_tuple %154
  %v156 = vsub.f32 %v151, %v153
  %157 = xla_tuple %v156
  %s158 = scalar_lea.vmem %s2, 120
  %159 = vst [vmem:[%s158] sm:$0xff] %v156

// kernel: _liten_forward_impl.3
$region0: #{_liten_forward_impl.3}
  #allocation0 [shape = 'u32[]', space=smem, size = 0x4, offset = 0x4, fixed_abs, tag = 'smem constant byte address 0x4 - core index']
  #allocation1 [shape = 'u32[144,128]{1,0:T(1,128)}', space=vmem, size = 0x12000, scoped, tag = 'internal scratch']
  #allocation2 [shape = 'f32[1,1]{1,0:T(1,128)S(1)}', space=vmem, size = 0x200, scoped, tag = 'scoped memory for _liten_forward_impl.3']
  %s0 = inlined_call_operand.vmem [shape: f32[16,128], index: 0, kind: input, shape index: {}]
  %s1 = inlined_call_operand.vmem [shape: f32[1,128], index: 1, kind: input, shape index: {}]
  %s2 = inlined_call_operand.vmem [shape: f32[1,128], index: 2, kind: input, shape index: {}]
  %s3 = inlined_call_operand.vmem [shape: f32[128,64], index: 3, kind: input, shape index: {}]
  %s4 = inlined_call_operand.vmem [shape: f32[1,64], index: 4, kind: input, shape index: {}]
  %s5 = inlined_call_operand.vmem [shape: f32[1,64], index: 5, kind: input, shape index: {}]
  %s6 = inlined_call_operand.<no memory space> [shape: f32[1,1], index: 6, kind: input, shape index: {}]
  %s7 = inlined_call_operand.vmem [shape: f32[16,1], index: 7, kind: output, shape index: {}]
  %s8 = sld [smem:[#allocation0]]
  $region38: #{_liten_forward_impl.3} parent=0
    _
  %s10 = ssub.s32 1, %s8
  %s11 = scalar_select 0, %s10, %s8
  %v12 = vstv %s6
  %13 = vst [vmem:[#allocation2] sm:$0x1] %v12
  // Predicated region
  $region2: #{_liten_forward_impl.3} parent=0 // pred_check
    _
  $region3: #{_liten_forward_impl.3} parent=0 // pred_check_branch
    %15 = sbr.rel (0) target = $region5
  $region4: #{_liten_forward_impl.3} parent=0 // pred_region
    _
  $region5: #{_liten_forward_impl.3} parent=0 // pred_fallthru
    _
  // Predicated region
  $region6: #{_liten_forward_impl.3} parent=0 // pred_check
    _
  $region7: #{_liten_forward_impl.3} parent=0 // pred_check_branch
    %17 = sbr.rel (0) target = $region9
  $region8: #{_liten_forward_impl.3} parent=0 // pred_region
    _
  $region9: #{_liten_forward_impl.3} parent=0 // pred_fallthru
    _
  // Predicated region
  $region10: #{_liten_forward_impl.3} parent=0 // pred_check
    _
  $region11: #{_liten_forward_impl.3} parent=0 // pred_check_branch
    %19 = sbr.rel (0) target = $region13
  $region12: #{_liten_forward_impl.3} parent=0 // pred_region
    _
  $region13: #{_liten_forward_impl.3} parent=0 // pred_fallthru
    _
  // Predicated region
  $region14: #{_liten_forward_impl.3} parent=0 // pred_check
    _
  $region15: #{_liten_forward_impl.3} parent=0 // pred_check_branch
    %21 = sbr.rel (0) target = $region17
  $region16: #{_liten_forward_impl.3} parent=0 // pred_region
    _
  $region17: #{_liten_forward_impl.3} parent=0 // pred_fallthru
    _
  // Predicated region
  $region18: #{_liten_forward_impl.3} parent=0 // pred_check
    _
  $region19: #{_liten_forward_impl.3} parent=0 // pred_check_branch
    %23 = sbr.rel (0) target = $region21
  $region20: #{_liten_forward_impl.3} parent=0 // pred_region
    _
  $region21: #{_liten_forward_impl.3} parent=0 // pred_fallthru
    _
  // Predicated region
  $region22: #{_liten_forward_impl.3} parent=0 // pred_check
    _
  $region23: #{_liten_forward_impl.3} parent=0 // pred_check_branch
    %25 = sbr.rel (0) target = $region25
  $region24: #{_liten_forward_impl.3} parent=0 // pred_region
    _
  $region25: #{_liten_forward_impl.3} parent=0 // pred_fallthru
    _
  // Predicated region
  $region26: #{_liten_forward_impl.3} parent=0 // pred_check
    _
  $region27: #{_liten_forward_impl.3} parent=0 // pred_check_branch
    %27 = sbr.rel (0) target = $region29
  $region28: #{_liten_forward_impl.3} parent=0 // pred_region
    _
  $region29: #{_liten_forward_impl.3} parent=0 // pred_fallthru
    _
  %v28 = vld [vmem:[%s0] sm:$0xff]
  %v29 = vld [vmem:[%s0 + $0x8] sm:$0xff]
  %30 = vadd.xlane.f32.xlu0 %v28
  %v31 = vpop.xlane.xlu0 %30
  %32 = vadd.xlane.f32.xlu0 %v29
  %v33 = vpop.xlane.xlu0 %32
  %v34 = vrcp.pop 128.0
  %v35 = vmul.f32 %v31, %v34
  %v36 = vmul.f32 %v33, %v34
  %v37 = vsub.f32 %v28, %v35
  %v38 = vsub.f32 %v29, %v36
  %v39 = vmul.f32 %v37, %v37
  %v40 = vmul.f32 %v38, %v38
  %41 = vadd.xlane.f32.xlu0 %v39
  %v42 = vpop.xlane.xlu0 %41
  %43 = vadd.xlane.f32.xlu0 %v40
  %v44 = vpop.xlane.xlu0 %43
  %v45 = vmul.f32 %v42, %v34
  %v46 = vmul.f32 %v44, %v34
  %v47 = vadd.f32 %v45, 1e-05
  %v48 = vadd.f32 %v46, 1e-05
  %v49 = vrsqrt.pop %v47
  %v50 = vrsqrt.pop %v48
  %v51 = vmul.f32 %v37, %v49
  %v52 = vmul.f32 %v38, %v50
  %v53 = vld [vmem:[%s1] sm:$0x1]
  %v55 = vlaneseq
  %v56 = vshrl.u32 %v55, 7
  %v57 = vsub.s32 0, %v56
  %v58 = vrot.slane %v53, %v57
  %v60 = vmul.f32 %v51, %v58
  %v61 = vmul.f32 %v52, %v58
  %v62 = vld [vmem:[%s2] sm:$0x1]
  %v64 = vlaneseq
  %v65 = vshrl.u32 %v64, 7
  %v66 = vsub.s32 0, %v65
  %v67 = vrot.slane %v62, %v66
  %v69 = vadd.f32 %v60, %v67
  %v70 = vadd.f32 %v61, %v67
  %v71 = vld [vmem:[%s3] sm:$0xff]
  %v72 = vld [vmem:[%s3 + $0x8] sm:$0xff]
  %v73 = vld [vmem:[%s3 + $0x10] sm:$0xff]
  %v74 = vld [vmem:[%s3 + $0x18] sm:$0xff]
  %v75 = vld [vmem:[%s3 + $0x20] sm:$0xff]
  %v76 = vld [vmem:[%s3 + $0x28] sm:$0xff]
  %v77 = vld [vmem:[%s3 + $0x30] sm:$0xff]
  %v78 = vld [vmem:[%s3 + $0x38] sm:$0xff]
  %v79 = vld [vmem:[%s3 + $0x40] sm:$0xff]
  %v80 = vld [vmem:[%s3 + $0x48] sm:$0xff]
  %v81 = vld [vmem:[%s3 + $0x50] sm:$0xff]
  %v82 = vld [vmem:[%s3 + $0x58] sm:$0xff]
  %v83 = vld [vmem:[%s3 + $0x60] sm:$0xff]
  %v84 = vld [vmem:[%s3 + $0x68] sm:$0xff]
  %v85 = vld [vmem:[%s3 + $0x70] sm:$0xff]
  %v86 = vld [vmem:[%s3 + $0x78] sm:$0xff]
  %v87 = vld [vmem:[%s4] sm:$0x1]
  %v89 = vlaneseq
  %v90 = vshrl.u32 %v89, 7
  %v91 = vsub.s32 0, %v90
  %v92 = vrot.slane %v87, %v91
  %94 = vmatprep.subr.mxu0 0.0
  %95 = vmatpush1.msra.mxu0 %v71
  %96 = vmatprep.subr.mxu0 0.0
  %97 = vmatpush1.msra.mxu0 %v72
  %98 = vmatprep.subr.mxu0 0.0
  %99 = vmatpush1.msra.mxu0 %v73
  %100 = vmatprep.subr.mxu0 0.0
  %101 = vmatpush1.msra.mxu0 %v74
  %102 = vmatprep.subr.mxu0 0.0
  %103 = vmatpush1.msra.mxu0 %v75
  %104 = vmatprep.subr.mxu0 0.0
  %105 = vmatpush1.msra.mxu0 %v76
  %106 = vmatprep.subr.mxu0 0.0
  %107 = vmatpush1.msra.mxu0 %v77
  %108 = vmatprep.subr.mxu0 0.0
  %109 = vmatpush1.msra.mxu0 %v78
  %110 = vmatprep.subr.mxu0 0.0
  %111 = vmatpush1.msra.mxu0 %v79
  %112 = vmatprep.subr.mxu0 0.0
  %113 = vmatpush1.msra.mxu0 %v80
  %114 = vmatprep.subr.mxu0 0.0
  %115 = vmatpush1.msra.mxu0 %v81
  %116 = vmatprep.subr.mxu0 0.0
  %117 = vmatpush1.msra.mxu0 %v82
  %118 = vmatprep.subr.mxu0 0.0
  %119 = vmatpush1.msra.mxu0 %v83
  %120 = vmatprep.subr.mxu0 0.0
  %121 = vmatpush1.msra.mxu0 %v84
  %122 = vmatprep.subr.mxu0 0.0
  %123 = vmatpush1.msra.mxu0 %v85
  %124 = vmatprep.subr.mxu0 0.0
  %125 = vmatpush1.msra.mxu0 %v86
  %126 = vmatprep.subr.mxu0 0.0
  %127 = vmatpush1.msra.mxu0 0.0
  %128 = vmatprep.subr.mxu0 0.0
  %129 = vmatpush1.msra.mxu0 0.0
  %130 = vmatprep.subr.mxu0 0.0
  %131 = vmatpush1.msra.mxu0 0.0
  %132 = vmatprep.subr.mxu0 0.0
  %133 = vmatpush1.msra.mxu0 0.0
  %134 = vmatprep.subr.mxu0 0.0
  %135 = vmatpush1.msra.mxu0 0.0
  %136 = vmatprep.subr.mxu0 0.0
  %137 = vmatpush1.msra.mxu0 0.0
  %138 = vmatprep.subr.mxu0 0.0
  %139 = vmatpush1.msra.mxu0 0.0
  %140 = vmatprep.subr.mxu0 0.0
  %141 = vmatpush1.msra.mxu0 0.0
  %142 = vmatprep.subr.mxu0 0.0
  %143 = vmatpush1.msra.mxu0 0.0
  %144 = vmatprep.subr.mxu0 0.0
  %145 = vmatpush1.msra.mxu0 0.0
  %146 = vmatprep.subr.mxu0 0.0
  %147 = vmatpush1.msra.mxu0 0.0
  %148 = vmatprep.subr.mxu0 0.0
  %149 = vmatpush1.msra.mxu0 0.0
  %150 = vmatprep.subr.mxu0 0.0
  %151 = vmatpush1.msra.mxu0 0.0
  %152 = vmatprep.subr.mxu0 0.0
  %153 = vmatpush1.msra.mxu0 0.0
  %154 = vmatprep.subr.mxu0 0.0
  %155 = vmatpush1.msra.mxu0 0.0
  %156 = vmatprep.subr.mxu0 0.0
  %157 = vmatpush1.msra.mxu0 0.0
  %158 = vmatprep.mubr.f32.mxu0 0.0
  %159 = vmatmul.mubr.f32.gmra.mrb[0].mxu0 %v69
  %v160 = vpop.f32.mrb[0].mxu0
  %v161 = vadd.f32 %v92, %v160
  %v162 = vpop.f32.mrb[0].mxu0
  %163 = vmatprep.mubr.f32.mxu0 0.0
  %164 = vmatmul.mubr.f32.gmra.mrb[0].mxu0 %v70
  %v165 = vpop.f32.mrb[0].mxu0
  %v166 = vadd.f32 %v92, %v165
  %v167 = vpop.f32.mrb[0].mxu0
  %168 = vdwg.mxu0
  %v169 = vxor.u32 %v161, 2147483648
  %v170 = vxor.u32 %v166, 2147483648
  %v171 = vmul.f32 %v169, 1.442695
  %v172 = vpow.pop %v171
  %v173 = vmul.f32 %v170, 1.442695
  %v174 = vpow.pop %v173
  %v175 = vadd.f32 %v172, 1.0
  %v176 = vadd.f32 %v174, 1.0
  %v177 = vrcp.pop %v175
  %v178 = vmul.f32 1.0, %v177
  %v179 = vrcp.pop %v176
  %v180 = vmul.f32 1.0, %v179
  %v181 = vmul.f32 %v161, %v178
  %v182 = vmul.f32 %v166, %v180
  %v183 = vld [vmem:[%s5] sm:$0x1]
  %v185 = vlaneseq
  %v186 = vshrl.u32 %v185, 7
  %v187 = vsub.s32 0, %v186
  %v188 = vrot.slane %v183, %v187
  %v190 = vmul.f32 %v181, %v188
  %v191 = vmul.f32 %v182, %v188
  %vm192 = vcmask 523264
  %v193 = vsel %vm192, %v190, 0.0
  %194 = vadd.xlane.f32.xlu0 %v193
  %v195 = vpop.xlane.xlu0 %194
  %v196 = vsel %vm192, %v191, 0.0
  %197 = vadd.xlane.f32.xlu0 %v196
  %v198 = vpop.xlane.xlu0 %197
  %v199 = vld [vmem:[#allocation2] sm:$0x1]
  %v201 = vlaneseq
  %v202 = vshrl.u32 %v201, 7
  %v203 = vsub.s32 0, %v202
  %v204 = vrot.slane %v199, %v203
  %v206 = vadd.f32 %v195, %v204
  %v207 = vadd.f32 %v198, %v204
  %vm208 = vcmask 7168
  %209 = vst.msk [vmem:[%s7] sm:$0xff] %vm208, %v206
  %210 = vst.msk [vmem:[%s7 + $0x8] sm:$0xff] %vm208, %v207
  // Predicated region
  $region30: #{_liten_forward_impl.3} parent=0 // pred_check
    _
  $region31: #{_liten_forward_impl.3} parent=0 // pred_check_branch
    %212 = sbr.rel (0) target = $region33
  $region32: #{_liten_forward_impl.3} parent=0 // pred_region
    _
  $region33: #{_liten_forward_impl.3} parent=0 // pred_fallthru
    _
  // Predicated region
  $region34: #{_liten_forward_impl.3} parent=0 // pred_check
    _
  $region35: #{_liten_forward_impl.3} parent=0 // pred_check_branch
    %214 = sbr.rel (0) target = $region37
  $region36: #{_liten_forward_impl.3} parent=0 // pred_region
    _
  $region37: #{_liten_forward_impl.3} parent=0 // pred_fallthru
    _

// kernel: _liten_forward_impl.2
$region0: #{_liten_forward_impl.2}
  #allocation0 [shape = 'u32[]', space=smem, size = 0x4, offset = 0x4, fixed_abs, tag = 'smem constant byte address 0x4 - core index']
  #allocation1 [shape = 'u32[144,128]{1,0:T(1,128)}', space=vmem, size = 0x12000, scoped, tag = 'internal scratch']
  %s0 = inlined_call_operand.vmem [shape: f32[1,128], index: 0, kind: input, shape index: {}]
  %s1 = inlined_call_operand.vmem [shape: f32[32,1], index: 1, kind: input, shape index: {}]
  %s2 = inlined_call_operand.vmem [shape: f32[32,1], index: 2, kind: input, shape index: {}]
  %s3 = inlined_call_operand.vmem [shape: f32[128,32], index: 3, kind: input, shape index: {}]
  %s4 = inlined_call_operand.vmem [shape: f32[1,128], index: 4, kind: input, shape index: {}]
  %s5 = inlined_call_operand.hbm [shape: bf16[128,128], index: 5, kind: output, shape index: {}]
  %s6 = sld [smem:[#allocation0]]
  $region30: #{_liten_forward_impl.2} parent=0
    _
  %s8 = ssub.s32 1, %s6
  %s9 = scalar_select 0, %s8, %s6
  $region1: #{_liten_forward_impl.2} parent=0
    #allocation2 [shape = 'u8[32768]{0}', space=vmem, size = 0x8000, scoped, tag = 'output window, operand 0, single buffered']
    #allocation3 [shape = 's32[1]{0}', space=sflag, size = 0x4, scoped, tag = 'scoped memory for _liten_forward_impl.2']
    %10 = vsyncpa [#allocation3], 0
    // Predicated region
    $region2: #{_liten_forward_impl.2} parent=1 // pred_check
      _
    $region3: #{_liten_forward_impl.2} parent=1 // pred_check_branch
      %12 = sbr.rel (0) target = $region5
    $region4: #{_liten_forward_impl.2} parent=1 // pred_region
      _
    $region5: #{_liten_forward_impl.2} parent=1 // pred_fallthru
      _
    // Predicated region
    $region6: #{_liten_forward_impl.2} parent=1 // pred_check
      _
    $region7: #{_liten_forward_impl.2} parent=1 // pred_check_branch
      %14 = sbr.rel (0) target = $region9
    $region8: #{_liten_forward_impl.2} parent=1 // pred_region
      _
    $region9: #{_liten_forward_impl.2} parent=1 // pred_fallthru
      _
    // Predicated region
    $region10: #{_liten_forward_impl.2} parent=1 // pred_check
      _
    $region11: #{_liten_forward_impl.2} parent=1 // pred_check_branch
      %16 = sbr.rel (0) target = $region13
    $region12: #{_liten_forward_impl.2} parent=1 // pred_region
      _
    $region13: #{_liten_forward_impl.2} parent=1 // pred_fallthru
      _
    // Predicated region
    $region14: #{_liten_forward_impl.2} parent=1 // pred_check
      _
    $region15: #{_liten_forward_impl.2} parent=1 // pred_check_branch
      %18 = sbr.rel (0) target = $region17
    $region16: #{_liten_forward_impl.2} parent=1 // pred_region
      _
    $region17: #{_liten_forward_impl.2} parent=1 // pred_fallthru
      _
    // Predicated region
    $region18: #{_liten_forward_impl.2} parent=1 // pred_check
      _
    $region19: #{_liten_forward_impl.2} parent=1 // pred_check_branch
      %20 = sbr.rel (0) target = $region21
    $region20: #{_liten_forward_impl.2} parent=1 // pred_region
      _
    $region21: #{_liten_forward_impl.2} parent=1 // pred_fallthru
      _
    %v22 = vld [vmem:[%s0] sm:$0x1]
    %vm23 = vcmp.lt.f32.partialorder %v22, 5.0
    %v24 = vmul.f32 %v22, 0.62831855
    %v25 = vand.u32 2147483647, %v24
    %vm26 = vcmp.le.f32.partialorder %v25, 0.7853982
    %vm27 = vcmp.lt.s32.totalorder %v24, 0
    %v28 = vand.u32 %v24, 2139095040
    %v29 = vshrl.u32 %v28, 23
    %v30 = vsub.s32 %v29, 127
    %v31 = vand.u32 2147483647, %v24
    %v32 = vand.u32 %v31, 8388607
    %v33 = vor.u32 %v32, 8388608
    %v34 = vsub.s32 0, %v33
    %v35 = vadd.s32 %v30, 1
    %vm36 = vcmp.gt.s32.totalorder %v35, 0
    %v37 = vsel %vm36, %v35, 0
    %v38 = vshrl.u32 %v37, 5
    %v39 = vand.u32 %v37, 31
    %v40 = vsub.s32 32, %v39
    %v41 = vshrl.u32 683565275, %v40
    %v42 = vshll.u32 683565275, %v39
    %v43 = vshrl.u32 2475754826, %v40
    %v44 = vor.u32 %v42, %v43
    %v45 = vshll.u32 2475754826, %v39
    %v46 = vshrl.u32 2131351028, %v40
    %v47 = vor.u32 %v45, %v46
    %v48 = vshll.u32 2131351028, %v39
    %v49 = vshrl.u32 2102212464, %v40
    %v50 = vor.u32 %v48, %v49
    %v51 = vshll.u32 2102212464, %v39
    %v52 = vshrl.u32 920167782, %v40
    %v53 = vor.u32 %v51, %v52
    %v54 = vshll.u32 920167782, %v39
    %v55 = vshrl.u32 1326507024, %v40
    %v56 = vor.u32 %v54, %v55
    %vm57 = vcmp.lt.s32.totalorder %v38, 1
    %vm58 = vcmp.lt.s32.totalorder %v38, 2
    %vm59 = vcmp.lt.s32.totalorder %v38, 3
    %vm60 = vcmp.lt.s32.totalorder %v38, 4
    %v61 = vsel %vm57, %v41, %v44
    %v62 = vsel %vm60, %v50, 2102212464
    %v63 = vsel %vm59, %v47, %v62
    %v64 = vsel %vm58, %v61, %v63
    %v65 = vsel %vm57, %v44, %v47
    %v66 = vsel %vm60, %v53, 920167782
    %v67 = vsel %vm59, %v50, %v66
    %v68 = vsel %vm58, %v65, %v67
    %v69 = vsel %vm57, %v47, %v50
    %v70 = vsel %vm60, %v56, 1326507024
    %v71 = vsel %vm59, %v53, %v70
    %v72 = vsel %vm58, %v69, %v71
    %v73 = vshll.u32 %v33, 8
    %v74 = vmul.u32.u64.compose %v73, %v72
    %v75 = vextract.low.u32 %v74
    %v76 = vextract.high.u32 %v74
    %v77 = vmul.u32.u64.compose %v73, %v68
    %v78 = vextract.low.u32 %v77
    %v79 = vextract.high.u32 %v77
    %v80 = vmul.u32 %v73, %v64
    %v81 = vadd.s32 %v76, %v78
    %vm82 = vc.u32 %v76, %v78
    %v83 = vadd.s32 %v79, 1
    %v84 = vsel %vm82, %v83, %v79
    %v85 = vadd.s32 %v80, %v84
    %v86 = vadd.s32 %v85, 536870912
    %v87 = vshrl.u32 %v86, 30
    %v88 = vshll.u32 %v87, 30
    %v89 = vsub.s32 %v85, %v88
    %vm90 = vcmp.lt.s32.totalorder %v89, 0
    %v91 = vsub.s32 0, %v89
    %v92 = vsel %vm90, %v91, %v89
    %v93 = vclz %v92
    %v94 = vsub.s32 %v93, 2
    %vm95 = vcmp.gt.s32.totalorder 0, %v94
    %v96 = vsel %vm95, 0, %v94
    %v97 = vsub.s32 32, %v96
    %v98 = vshll.u32 %v89, %v96
    %v99 = vshrl.u32 %v81, %v97
    %v100 = vor.u32 %v98, %v99
    %v101 = vsub.s32 4294967266, %v96
    %v102 = vadd.s32 %v101, 127
    %v103 = vshll.u32 %v102, 23
    %v104 = vor.u32 4788187, %v103
    %v105 = vand.u32 2147483647, %v104
    %v107 = vcvt.s32.f32 %v100
    %v108 = vmul.f32 %v107, %v105
    %v109 = vxor.u32 %v108, 2147483648
    %v110 = vsel %vm27, %v109, %v108
    %v111 = vsub.s32 4, %v87
    %v112 = vsel %vm27, %v111, %v87
    %v113 = vsel %vm26, %v24, %v110
    %v114 = vsel %vm26, 0, %v112
    %v115 = vcosq.f32.pop %v113
    %v116 = vsinq.f32.pop %v113
    %vm117 = vweird.f32 %v24
    %v118 = vand.u32 %v114, 3
    %vm119 = vcmp.lt.s32.totalorder %v118, 2
    %vm120 = vcmp.eq.s32.totalorder %v118, 0
    %v121 = vxor.u32 %v116, 2147483648
    %v122 = vsel %vm120, %v115, %v121
    %vm123 = vcmp.eq.s32.totalorder %v118, 2
    %v124 = vxor.u32 %v115, 2147483648
    %v125 = vsel %vm123, %v124, %v116
    %v126 = vsel %vm119, %v122, %v125
    %v127 = vsel %vm117, nan, %v126
    %v128 = vadd.f32 %v127, 1.0
    %v129 = vmul.f32 %v128, 0.5
    %v130 = vsel %vm23, %v129, 0.0
    %v131 = vmul.f32 %v22, -1.0
    %v132 = vmul.f32 %v131, 1.442695
    %v133 = vpow.pop %v132
    %v134 = vld [vmem:[%s2] sm:$0xff]
    %v135 = vld [vmem:[%s2 + $0x8] sm:$0xff]
    %v136 = vld [vmem:[%s2 + $0x10] sm:$0xff]
    %v137 = vld [vmem:[%s2 + $0x18] sm:$0xff]
    %v138 = vsub.f32 0.0, %v134
    %v139 = vsub.f32 0.0, %v135
    %v140 = vsub.f32 0.0, %v136
    %v141 = vsub.f32 0.0, %v137
    %v142 = vld [vmem:[%s1] sm:$0xff]
    %v143 = vld [vmem:[%s1 + $0x8] sm:$0xff]
    %v144 = vld [vmem:[%s1 + $0x10] sm:$0xff]
    %v145 = vld [vmem:[%s1 + $0x18] sm:$0xff]
    %v147 = vlaneseq
    %v148 = vshrl.u32 %v147, 7
    %v149 = vsub.s32 0, %v148
    %v150 = vrot.slane %v133, %v149
    %153 = vset.pattern.permute.xlu0 0
    %154 = vperm.xlu0 %153, %v142
    %v155 = vpop.permute.xlu0 %154
    %158 = vset.pattern.permute.xlu0 0
    %159 = vperm.xlu0 %158, %v143
    %v160 = vpop.permute.xlu0 %159
    %163 = vset.pattern.permute.xlu0 0
    %164 = vperm.xlu0 %163, %v144
    %v165 = vpop.permute.xlu0 %164
    %168 = vset.pattern.permute.xlu0 0
    %169 = vperm.xlu0 %168, %v145
    %v170 = vpop.permute.xlu0 %169
    %v172 = vsub.f32 %v150, %v155
    %v173 = vsub.f32 %v150, %v160
    %v174 = vsub.f32 %v150, %v165
    %v175 = vsub.f32 %v150, %v170
    %v176 = vmul.f32 %v172, %v172
    %v177 = vmul.f32 %v173, %v173
    %v178 = vmul.f32 %v174, %v174
    %v179 = vmul.f32 %v175, %v175
    %181 = vset.pattern.permute.xlu0 0
    %182 = vperm.xlu0 %181, %v138
    %v183 = vpop.permute.xlu0 %182
    %186 = vset.pattern.permute.xlu0 0
    %187 = vperm.xlu0 %186, %v139
    %v188 = vpop.permute.xlu0 %187
    %191 = vset.pattern.permute.xlu0 0
    %192 = vperm.xlu0 %191, %v140
    %v193 = vpop.permute.xlu0 %192
    %196 = vset.pattern.permute.xlu0 0
    %197 = vperm.xlu0 %196, %v141
    %v198 = vpop.permute.xlu0 %197
    %v200 = vmul.f32 %v183, %v176
    %v201 = vmul.f32 %v188, %v177
    %v202 = vmul.f32 %v193, %v178
    %v203 = vmul.f32 %v198, %v179
    %v204 = vmul.f32 %v200, 1.442695
    %v205 = vpow.pop %v204
    %v206 = vmul.f32 %v201, 1.442695
    %v207 = vpow.pop %v206
    %v208 = vmul.f32 %v202, 1.442695
    %v209 = vpow.pop %v208
    %v210 = vmul.f32 %v203, 1.442695
    %v211 = vpow.pop %v210
    %v213 = vlaneseq
    %v214 = vshrl.u32 %v213, 7
    %v215 = vsub.s32 0, %v214
    %v216 = vrot.slane %v130, %v215
    %v218 = vmul.f32 %v216, %v205
    %v219 = vmul.f32 %v216, %v207
    %v220 = vmul.f32 %v216, %v209
    %v221 = vmul.f32 %v216, %v211
    %v222 = vpack.c.bf16 %v219, %v218
    %v223 = vpack.c.bf16 %v221, %v220
    %v224 = vld [vmem:[%s3] sm:$0xff]
    %v225 = vld [vmem:[%s3 + $0x8] sm:$0xff]
    %v226 = vld [vmem:[%s3 + $0x10] sm:$0xff]
    %v227 = vld [vmem:[%s3 + $0x18] sm:$0xff]
    %v228 = vld [vmem:[%s3 + $0x20] sm:$0xff]
    %v229 = vld [vmem:[%s3 + $0x28] sm:$0xff]
    %v230 = vld [vmem:[%s3 + $0x30] sm:$0xff]
    %v231 = vld [vmem:[%s3 + $0x38] sm:$0xff]
    %v232 = vld [vmem:[%s3 + $0x40] sm:$0xff]
    %v233 = vld [vmem:[%s3 + $0x48] sm:$0xff]
    %v234 = vld [vmem:[%s3 + $0x50] sm:$0xff]
    %v235 = vld [vmem:[%s3 + $0x58] sm:$0xff]
    %v236 = vld [vmem:[%s3 + $0x60] sm:$0xff]
    %v237 = vld [vmem:[%s3 + $0x68] sm:$0xff]
    %v238 = vld [vmem:[%s3 + $0x70] sm:$0xff]
    %v239 = vld [vmem:[%s3 + $0x78] sm:$0xff]
    %v240 = vpack.c.bf16 %v225, %v224
    %v241 = vpack.c.bf16 %v227, %v226
    %v242 = vpack.c.bf16 %v229, %v228
    %v243 = vpack.c.bf16 %v231, %v230
    %v244 = vpack.c.bf16 %v233, %v232
    %v245 = vpack.c.bf16 %v235, %v234
    %v246 = vpack.c.bf16 %v237, %v236
    %v247 = vpack.c.bf16 %v239, %v238
    %v248 = vld [vmem:[%s4] sm:$0x1]
    %v250 = vlaneseq
    %v251 = vshrl.u32 %v250, 7
    %v252 = vsub.s32 0, %v251
    %v253 = vrot.slane %v248, %v252
    %255 = vxpose.xlu0.c.b16.start [1/8] %v222, 128
    %256 = vxpose.xlu0.c.b16.cont [2/8] %v223, 128
    %257 = vxpose.xlu0.c.b16.cont [3/8] 0, 128
    %258 = vxpose.xlu0.c.b16.cont [4/8] 0, 128
    %259 = vxpose.xlu0.c.b16.cont [5/8] 0, 128
    %260 = vxpose.xlu0.c.b16.cont [6/8] 0, 128
    %261 = vxpose.xlu0.c.b16.cont [7/8] 0, 128
    %262 = vxpose.xlu0.c.b16.end [8/8] 0, 128
    %v263 = vpop.trf.xlu0
    %v264 = vpop.trf.xlu0
    %v265 = vpop.trf.xlu0
    %v266 = vpop.trf.xlu0
    %v267 = vpop.trf.xlu0
    %v268 = vpop.trf.xlu0
    %v269 = vpop.trf.xlu0
    %v270 = vpop.trf.xlu0
    %vm271 = vcmask 261120
    %v273 = vsel %vm271, %v263, 0
    %v276 = vsel %vm271, %v264, 0
    %v279 = vsel %vm271, %v265, 0
    %v282 = vsel %vm271, %v266, 0
    %v285 = vsel %vm271, %v267, 0
    %v288 = vsel %vm271, %v268, 0
    %v291 = vsel %vm271, %v269, 0
    %v294 = vsel %vm271, %v270, 0
    %v297 = vsel %vm271, %v240, 0
    %v300 = vsel %vm271, %v241, 0
    %v303 = vsel %vm271, %v242, 0
    %v306 = vsel %vm271, %v243, 0
    %v309 = vsel %vm271, %v244, 0
    %v312 = vsel %vm271, %v245, 0
    %v315 = vsel %vm271, %v246, 0
    %v318 = vsel %vm271, %v247, 0
    %320 = vmatprep.subr.bf16.mxu0 0
    %321 = vmatpush1.bf16.xpose.msra.mxu0 %v297
    %322 = vmatprep.subr.bf16.mxu0 0
    %323 = vmatpush1.bf16.xpose.msra.mxu0 %v300
    %324 = vmatprep.subr.bf16.mxu0 0
    %325 = vmatpush1.bf16.xpose.msra.mxu0 %v303
    %326 = vmatprep.subr.bf16.mxu0 0
    %327 = vmatpush1.bf16.xpose.msra.mxu0 %v306
    %328 = vmatprep.subr.bf16.mxu0 0
    %329 = vmatpush1.bf16.xpose.msra.mxu0 %v309
    %330 = vmatprep.subr.bf16.mxu0 0
    %331 = vmatpush1.bf16.xpose.msra.mxu0 %v312
    %332 = vmatprep.subr.bf16.mxu0 0
    %333 = vmatpush1.bf16.xpose.msra.mxu0 %v315
    %334 = vmatprep.subr.bf16.mxu0 0
    %335 = vmatpush1.bf16.xpose.msra.mxu0 %v318
    %336 = vmatprep.subr.bf16.mxu0 0
    %337 = vmatpush1.bf16.xpose.msra.mxu0 0
    %338 = vmatprep.subr.bf16.mxu0 0
    %339 = vmatpush1.bf16.xpose.msra.mxu0 0
    %340 = vmatprep.subr.bf16.mxu0 0
    %341 = vmatpush1.bf16.xpose.msra.mxu0 0
    %342 = vmatprep.subr.bf16.mxu0 0
    %343 = vmatpush1.bf16.xpose.msra.mxu0 0
    %344 = vmatprep.subr.bf16.mxu0 0
    %345 = vmatpush1.bf16.xpose.msra.mxu0 0
    %346 = vmatprep.subr.bf16.mxu0 0
    %347 = vmatpush1.bf16.xpose.msra.mxu0 0
    %348 = vmatprep.subr.bf16.mxu0 0
    %349 = vmatpush1.bf16.xpose.msra.mxu0 0
    %350 = vmatprep.subr.bf16.mxu0 0
    %351 = vmatpush1.bf16.xpose.msra.mxu0 0
    %352 = vmatprep.mubr.bf16.mxu0 0
    %353 = vmatmul.mubr.bf16.gmra.mrb[0].mxu0 %v273
    %v354 = vpop.f32.mrb[0].mxu0
    %v355 = vadd.f32 %v253, %v354
    %v356 = vpop.f32.mrb[0].mxu0
    %v357 = vpop.f32.mrb[0].mxu0
    %v358 = vadd.f32 %v253, %v357
    %v359 = vpop.f32.mrb[0].mxu0
    %360 = vmatprep.mubr.bf16.mxu0 0
    %361 = vmatmul.mubr.bf16.gmra.mrb[0].mxu0 %v276
    %v362 = vpop.f32.mrb[0].mxu0
    %v363 = vadd.f32 %v253, %v362
    %v364 = vpop.f32.mrb[0].mxu0
    %v365 = vpop.f32.mrb[0].mxu0
    %v366 = vadd.f32 %v253, %v365
    %v367 = vpop.f32.mrb[0].mxu0
    %368 = vmatprep.mubr.bf16.mxu0 0
    %369 = vmatmul.mubr.bf16.gmra.mrb[0].mxu0 %v279
    %v370 = vpop.f32.mrb[0].mxu0
    %v371 = vadd.f32 %v253, %v370
    %v372 = vpop.f32.mrb[0].mxu0
    %v373 = vpop.f32.mrb[0].mxu0
    %v374 = vadd.f32 %v253, %v373
    %v375 = vpop.f32.mrb[0].mxu0
    %376 = vmatprep.mubr.bf16.mxu0 0
    %377 = vmatmul.mubr.bf16.gmra.mrb[0].mxu0 %v282
    %v378 = vpop.f32.mrb[0].mxu0
    %v379 = vadd.f32 %v253, %v378
    %v380 = vpop.f32.mrb[0].mxu0
    %v381 = vpop.f32.mrb[0].mxu0
    %v382 = vadd.f32 %v253, %v381
    %v383 = vpop.f32.mrb[0].mxu0
    %384 = vmatprep.mubr.bf16.mxu0 0
    %385 = vmatmul.mubr.bf16.gmra.mrb[0].mxu0 %v285
    %v386 = vpop.f32.mrb[0].mxu0
    %v387 = vadd.f32 %v253, %v386
    %v388 = vpop.f32.mrb[0].mxu0
    %v389 = vpop.f32.mrb[0].mxu0
    %v390 = vadd.f32 %v253, %v389
    %v391 = vpop.f32.mrb[0].mxu0
    %392 = vmatprep.mubr.bf16.mxu0 0
    %393 = vmatmul.mubr.bf16.gmra.mrb[0].mxu0 %v288
    %v394 = vpop.f32.mrb[0].mxu0
    %v395 = vadd.f32 %v253, %v394
    %v396 = vpop.f32.mrb[0].mxu0
    %v397 = vpop.f32.mrb[0].mxu0
    %v398 = vadd.f32 %v253, %v397
    %v399 = vpop.f32.mrb[0].mxu0
    %400 = vmatprep.mubr.bf16.mxu0 0
    %401 = vmatmul.mubr.bf16.gmra.mrb[0].mxu0 %v291
    %v402 = vpop.f32.mrb[0].mxu0
    %v403 = vadd.f32 %v253, %v402
    %v404 = vpop.f32.mrb[0].mxu0
    %v405 = vpop.f32.mrb[0].mxu0
    %v406 = vadd.f32 %v253, %v405
    %v407 = vpop.f32.mrb[0].mxu0
    %408 = vmatprep.mubr.bf16.mxu0 0
    %409 = vmatmul.mubr.bf16.gmra.mrb[0].mxu0 %v294
    %v410 = vpop.f32.mrb[0].mxu0
    %v411 = vadd.f32 %v253, %v410
    %v412 = vpop.f32.mrb[0].mxu0
    %v413 = vpop.f32.mrb[0].mxu0
    %v414 = vadd.f32 %v253, %v413
    %v415 = vpop.f32.mrb[0].mxu0
    %416 = vdwg.mxu0
    %v417 = vlaneseq
    %v418 = vshrl.u32 %v417, 7
    %v419 = vadd.s32 %v418, 8
    %v420 = vadd.s32 %v418, 16
    %v421 = vadd.s32 %v418, 24
    %v422 = vadd.s32 %v418, 32
    %v423 = vadd.s32 %v418, 40
    %v424 = vadd.s32 %v418, 48
    %v425 = vadd.s32 %v418, 56
    %v426 = vadd.s32 %v418, 64
    %v427 = vadd.s32 %v418, 72
    %v428 = vadd.s32 %v418, 80
    %v429 = vadd.s32 %v418, 88
    %v430 = vadd.s32 %v418, 96
    %v431 = vadd.s32 %v418, 104
    %v432 = vadd.s32 %v418, 112
    %v433 = vadd.s32 %v418, 120
    %s434 = smul.u32 0, 128
    %v435 = vstv %s434
    %v436 = vadd.s32 %v418, %v435
    %v437 = vadd.s32 %v419, %v435
    %v438 = vadd.s32 %v420, %v435
    %v439 = vadd.s32 %v421, %v435
    %v440 = vadd.s32 %v422, %v435
    %v441 = vadd.s32 %v423, %v435
    %v442 = vadd.s32 %v424, %v435
    %v443 = vadd.s32 %v425, %v435
    %v444 = vadd.s32 %v426, %v435
    %v445 = vadd.s32 %v427, %v435
    %v446 = vadd.s32 %v428, %v435
    %v447 = vadd.s32 %v429, %v435
    %v448 = vadd.s32 %v430, %v435
    %v449 = vadd.s32 %v431, %v435
    %v450 = vadd.s32 %v432, %v435
    %v451 = vadd.s32 %v433, %v435
    %vm452 = vcmp.lt.s32.totalorder %v436, 128
    %vm453 = vcmp.lt.s32.totalorder %v437, 128
    %vm454 = vcmp.lt.s32.totalorder %v438, 128
    %vm455 = vcmp.lt.s32.totalorder %v439, 128
    %vm456 = vcmp.lt.s32.totalorder %v440, 128
    %vm457 = vcmp.lt.s32.totalorder %v441, 128
    %vm458 = vcmp.lt.s32.totalorder %v442, 128
    %vm459 = vcmp.lt.s32.totalorder %v443, 128
    %vm460 = vcmp.lt.s32.totalorder %v444, 128
    %vm461 = vcmp.lt.s32.totalorder %v445, 128
    %vm462 = vcmp.lt.s32.totalorder %v446, 128
    %vm463 = vcmp.lt.s32.totalorder %v447, 128
    %vm464 = vcmp.lt.s32.totalorder %v448, 128
    %vm465 = vcmp.lt.s32.totalorder %v449, 128
    %vm466 = vcmp.lt.s32.totalorder %v450, 128
    %vm467 = vcmp.lt.s32.totalorder %v451, 128
    %v468 = vsel %vm452, 1, 0
    %v469 = vsel %vm453, 1, 0
    %v470 = vsel %vm454, 1, 0
    %v471 = vsel %vm455, 1, 0
    %v472 = vsel %vm456, 1, 0
    %v473 = vsel %vm457, 1, 0
    %v474 = vsel %vm458, 1, 0
    %v475 = vsel %vm459, 1, 0
    %v476 = vsel %vm460, 1, 0
    %v477 = vsel %vm461, 1, 0
    %v478 = vsel %vm462, 1, 0
    %v479 = vsel %vm463, 1, 0
    %v480 = vsel %vm464, 1, 0
    %v481 = vsel %vm465, 1, 0
    %v482 = vsel %vm466, 1, 0
    %v483 = vsel %vm467, 1, 0
    %vm484 = vcmp.eq.s32.totalorder %v468, 1
    %vm485 = vcmp.eq.s32.totalorder %v469, 1
    %vm486 = vcmp.eq.s32.totalorder %v470, 1
    %vm487 = vcmp.eq.s32.totalorder %v471, 1
    %vm488 = vcmp.eq.s32.totalorder %v472, 1
    %vm489 = vcmp.eq.s32.totalorder %v473, 1
    %vm490 = vcmp.eq.s32.totalorder %v474, 1
    %vm491 = vcmp.eq.s32.totalorder %v475, 1
    %vm492 = vcmp.eq.s32.totalorder %v476, 1
    %vm493 = vcmp.eq.s32.totalorder %v477, 1
    %vm494 = vcmp.eq.s32.totalorder %v478, 1
    %vm495 = vcmp.eq.s32.totalorder %v479, 1
    %vm496 = vcmp.eq.s32.totalorder %v480, 1
    %vm497 = vcmp.eq.s32.totalorder %v481, 1
    %vm498 = vcmp.eq.s32.totalorder %v482, 1
    %vm499 = vcmp.eq.s32.totalorder %v483, 1
    %v500 = vsel %vm484, %v355, 0.0
    %v501 = vsel %vm485, %v358, 0.0
    %v502 = vsel %vm486, %v363, 0.0
    %v503 = vsel %vm487, %v366, 0.0
    %v504 = vsel %vm488, %v371, 0.0
    %v505 = vsel %vm489, %v374, 0.0
    %v506 = vsel %vm490, %v379, 0.0
    %v507 = vsel %vm491, %v382, 0.0
    %v508 = vsel %vm492, %v387, 0.0
    %v509 = vsel %vm493, %v390, 0.0
    %v510 = vsel %vm494, %v395, 0.0
    %v511 = vsel %vm495, %v398, 0.0
    %v512 = vsel %vm496, %v403, 0.0
    %v513 = vsel %vm497, %v406, 0.0
    %v514 = vsel %vm498, %v411, 0.0
    %v515 = vsel %vm499, %v414, 0.0
    %v516 = vpack.c.bf16 %v501, %v500
    %v517 = vpack.c.bf16 %v503, %v502
    %v518 = vpack.c.bf16 %v505, %v504
    %v519 = vpack.c.bf16 %v507, %v506
    %v520 = vpack.c.bf16 %v509, %v508
    %v521 = vpack.c.bf16 %v511, %v510
    %v522 = vpack.c.bf16 %v513, %v512
    %v523 = vpack.c.bf16 %v515, %v514
    %v532 = vunpack.c.l.b16 %v516
    %v533 = vunpack.c.h.b16 %v516
    %v534 = vunpack.c.l.b16 %v517
    %v535 = vunpack.c.h.b16 %v517
    %v536 = vunpack.c.l.b16 %v518
    %v537 = vunpack.c.h.b16 %v518
    %v538 = vunpack.c.l.b16 %v519
    %v539 = vunpack.c.h.b16 %v519
    %v540 = vunpack.c.l.b16 %v520
    %v541 = vunpack.c.h.b16 %v520
    %v542 = vunpack.c.l.b16 %v521
    %v543 = vunpack.c.h.b16 %v521
    %v544 = vunpack.c.l.b16 %v522
    %v545 = vunpack.c.h.b16 %v522
    %v546 = vunpack.c.l.b16 %v523
    %v547 = vunpack.c.h.b16 %v523
    %v548 = vpack.c.b16 %v532, %v532
    %v549 = vpack.c.b16 %v533, %v533
    %v550 = vpack.c.b16 %v534, %v534
    %v551 = vpack.c.b16 %v535, %v535
    %v552 = vpack.c.b16 %v536, %v536
    %v553 = vpack.c.b16 %v537, %v537
    %v554 = vpack.c.b16 %v538, %v538
    %v555 = vpack.c.b16 %v539, %v539
    %v556 = vpack.c.b16 %v540, %v540
    %v557 = vpack.c.b16 %v541, %v541
    %v558 = vpack.c.b16 %v542, %v542
    %v559 = vpack.c.b16 %v543, %v543
    %v560 = vpack.c.b16 %v544, %v544
    %v561 = vpack.c.b16 %v545, %v545
    %v562 = vpack.c.b16 %v546, %v546
    %v563 = vpack.c.b16 %v547, %v547
    %580 = vst [vmem:[#allocation2] sm:$0xf] %v548
    %581 = vst [vmem:[#allocation2 + $0x4] sm:$0xf] %v549
    %582 = vst [vmem:[#allocation2 + $0x8] sm:$0xf] %v550
    %583 = vst [vmem:[#allocation2 + $0xc] sm:$0xf] %v551
    %584 = vst [vmem:[#allocation2 + $0x10] sm:$0xf] %v552
    %585 = vst [vmem:[#allocation2 + $0x14] sm:$0xf] %v553
    %586 = vst [vmem:[#allocation2 + $0x18] sm:$0xf] %v554
    %587 = vst [vmem:[#allocation2 + $0x1c] sm:$0xf] %v555
    %588 = vst [vmem:[#allocation2 + $0x20] sm:$0xf] %v556
    %589 = vst [vmem:[#allocation2 + $0x24] sm:$0xf] %v557
    %590 = vst [vmem:[#allocation2 + $0x28] sm:$0xf] %v558
    %591 = vst [vmem:[#allocation2 + $0x2c] sm:$0xf] %v559
    %592 = vst [vmem:[#allocation2 + $0x30] sm:$0xf] %v560
    %593 = vst [vmem:[#allocation2 + $0x34] sm:$0xf] %v561
    %594 = vst [vmem:[#allocation2 + $0x38] sm:$0xf] %v562
    %595 = vst [vmem:[#allocation2 + $0x3c] sm:$0xf] %v563
    // Predicated region
    $region22: #{_liten_forward_impl.2} parent=1 // pred_check
      _
    $region23: #{_liten_forward_impl.2} parent=1 // pred_check_branch
      %597 = sbr.rel (0) target = $region25
    $region24: #{_liten_forward_impl.2} parent=1 // pred_region
      %s599 = ssub.s32 1024, 1024
      %600 = vsyncadd [#allocation3], %s599
      %s601 = sshll.u32 [#allocation2], 4
      %s602 = int_to_ptr.vmem [resolvable:$true] %s601
      %607 = dma.vmem_to_hbm [thread:$0]  %s602, 1024, %s5, [#allocation3], 64, 64, 4
    $region25: #{_liten_forward_impl.2} parent=1 // pred_fallthru
      _
    // Predicated region
    $region26: #{_liten_forward_impl.2} parent=1 // pred_check
      _
    $region27: #{_liten_forward_impl.2} parent=1 // pred_check_branch
      %609 = sbr.rel (0) target = $region29
    $region28: #{_liten_forward_impl.2} parent=1 // pred_region
      %610 = dma.done [#allocation3], 1024
    $region29: #{_liten_forward_impl.2} parent=1 // pred_fallthru
      _
    %611 = vsyncpa [#allocation3], 1

</llo_original>
